<compile_context>
chip_gen: v6e
topology: v6e:2x2x1
jax: 0.10.0
libtpu: 0.0.40
codegen_flags: <defaults>
</compile_context>

<pallas_src>
import functools

import jax
import jax.numpy as jnp
import numpy as np
from jax.experimental import pallas as pl
from jax.experimental.pallas import tpu as pltpu


# ----------------------------------------------------------------------------
# Pass 1: minibatch-std scalar  (sqrt(var over batch, biased) + 1e-8).mean()
# ----------------------------------------------------------------------------
def _batch_std_kernel(x_ref, ms_ref, sum_ref, sq_ref, *, n_total):
    # x_ref  : [TN, 16, C] f32 tile of the (spatially flattened) input
    # ms_ref : [1, 1] f32 output (minibatch-std scalar)
    # sum_ref, sq_ref : [16, C] f32 accumulators (persist across grid steps)
    i = pl.program_id(0)

    @pl.when(i == 0)
    def _init():
        sum_ref[...] = jnp.zeros_like(sum_ref)
        sq_ref[...] = jnp.zeros_like(sq_ref)

    x = x_ref[...]
    sum_ref[...] += jnp.sum(x, axis=0)
    sq_ref[...] += jnp.sum(x * x, axis=0)

    @pl.when(i == pl.num_programs(0) - 1)
    def _finish():
        inv_n = 1.0 / n_total
        mean = sum_ref[...] * inv_n
        var = jnp.maximum(sq_ref[...] * inv_n - mean * mean, 0.0)  # biased var
        ms = jnp.mean(jnp.sqrt(var + 1e-8))
        ms_ref[...] = jnp.broadcast_to(ms, (1, 1))


# ----------------------------------------------------------------------------
# Pass 2: conv -> InstanceNorm -> LeakyReLU -> pool conv -> LeakyReLU -> Linear
# ----------------------------------------------------------------------------
def _decision_kernel(x_ref, ms_ref, wc_ref, wp_ref, s_ref, wo_ref, out_ref, *,
                     matmul_dtype):
    # x_ref  : [TN, 4, 4, C] f32 (NHWC batch tile)
    # ms_ref : [1] f32 in SMEM (minibatch-std scalar, hoisted out of this pass)
    # wc_ref : [9*C, C]   3x3-conv weights, im2col layout (matmul dtype)
    # wp_ref : [16*C, C]  4x4-conv weights, flattened      (matmul dtype)
    # s_ref  : [16, C] f32  std-channel tap-sum bias (per output position)
    # wo_ref : [C, 1] f32   final linear weights
    # out_ref: [TN, 1] f32
    tn = x_ref.shape[0]
    c = x_ref.shape[3]
    f32 = jnp.float32

    x = x_ref[...]
    ms = ms_ref[0]

    # zero-pad H and W by 1, entirely in registers
    zh = jnp.zeros((tn, 1, 4, c), f32)
    xp = jnp.concatenate([zh, x, zh], axis=1)        # [TN, 6, 4, C]
    zw = jnp.zeros((tn, 6, 1, c), f32)
    xp = jnp.concatenate([zw, xp, zw], axis=2)       # [TN, 6, 6, C]

    # im2col: the 9 shifted views, lane-concatenated -> [TN, 4, 4, 9C]
    taps = [xp[:, kh:kh + 4, kw:kw + 4, :] for kh in range(3) for kw in range(3)]
    patches = jnp.concatenate(taps, axis=-1)

    # single [16*TN, 9C] @ [9C, C] MXU matmul for the whole 3x3 conv
    lhs = jnp.concatenate(
        [patches[:, h, w, :] for h in range(4) for w in range(4)], axis=0)
    conv = jnp.dot(lhs.astype(matmul_dtype), wc_ref[...],
                   preferred_element_type=f32)       # [16*TN, C], row = p*TN + n

    # regroup to [TN, 16, C]; add the folded minibatch-std channel contribution
    conv = jnp.stack([conv[p * tn:(p + 1) * tn, :] for p in range(16)], axis=1)
    conv = conv + ms * s_ref[...]

    # InstanceNorm2d (affine=False, eps=1e-5, biased spatial var) + LeakyReLU(0.2)
    m = jnp.mean(conv, axis=1, keepdims=True)
    v = jnp.mean((conv - m) ** 2, axis=1, keepdims=True)
    y = (conv - m) * jax.lax.rsqrt(v + 1e-5)
    y = jnp.where(y > 0, y, 0.2 * y)

    # 4x4 valid conv == single [TN, 16C] @ [16C, C] matmul, then LeakyReLU(0.2)
    yflat = jnp.concatenate([y[:, p, :] for p in range(16)], axis=-1)  # [TN, 16C]
    pooled = jnp.dot(yflat.astype(matmul_dtype), wp_ref[...],
                     preferred_element_type=f32)
    pooled = jnp.where(pooled > 0, pooled, 0.2 * pooled)

    # Linear(C -> 1, bias=False)
    out_ref[...] = jnp.dot(pooled, wo_ref[...], preferred_element_type=f32)


# ----------------------------------------------------------------------------
# Wrapper
# ----------------------------------------------------------------------------
def _pick_batch_tile(n, row_bytes, budget_bytes=4 * 1024 * 1024):
    """Largest tile that divides n, is a multiple of 8 (or == n), fits budget."""
    if n * row_bytes <= budget_bytes:
        return n
    cand = [t for t in range(8, n, 8) if n % t == 0 and t * row_bytes <= budget_bytes]
    return max(cand) if cand else n


def decision_block(x_nchw, w_conv_oihw, w_pool_oihw, w_out_lin, *,
                   matmul_dtype=jnp.bfloat16, batch_tile=None):
    """x: [N, C, 4, 4]; weights in PyTorch layouts. Returns [N] logits."""
    N, C, H, W = x_nchw.shape
    assert (H, W) == (4, 4), "DecisionBlock requires 4x4 spatial input"

    # ---- layout / parameter preprocessing (pure data plumbing) ----
    x_nhwc = jnp.transpose(x_nchw, (0, 2, 3, 1)).astype(jnp.float32)        # [N,4,4,C]
    wc_hwio = jnp.transpose(w_conv_oihw, (2, 3, 1, 0)).astype(jnp.float32)  # [3,3,C+1,C]
    wc_mat = wc_hwio[:, :, :C, :].reshape(9 * C, C).astype(matmul_dtype)    # [9C, C]
    wp_mat = (jnp.transpose(w_pool_oihw, (2, 3, 1, 0))
              .reshape(16 * C, C).astype(matmul_dtype))                     # [16C, C]
    wo = jnp.transpose(w_out_lin, (1, 0)).astype(jnp.float32)               # [C, 1]

    # std channel folded into a per-output-position bias:
    # s_bias[p, co] = sum over in-bounds taps of wc[kh, kw, C, co]
    mask = np.zeros((16, 3, 3), np.float32)
    for h in range(4):
        for w in range(4):
            for kh in range(3):
                for kw in range(3):
                    if 0 <= h + kh - 1 < 4 and 0 <= w + kw - 1 < 4:
                        mask[h * 4 + w, kh, kw] = 1.0
    s_bias = jnp.einsum('pkl,klc->pc', jnp.asarray(mask), wc_hwio[:, :, C, :])  # [16,C]

    # ---- pass 1: minibatch-std scalar (cross-batch reduction) ----
    x_flat = x_nhwc.reshape(N, 16, C)
    tn_std = _pick_batch_tile(N, 16 * C * 4)
    mean_std = pl.pallas_call(
        functools.partial(_batch_std_kernel, n_total=float(N)),
        out_shape=jax.ShapeDtypeStruct((1, 1), jnp.float32),
        grid=(N // tn_std,),
        in_specs=[pl.BlockSpec((tn_std, 16, C), lambda i: (i, 0, 0))],
        out_specs=pl.BlockSpec((1, 1), lambda i: (0, 0)),
        scratch_shapes=[pltpu.VMEM((16, C), jnp.float32),
                        pltpu.VMEM((16, C), jnp.float32)],
        compiler_params=pltpu.CompilerParams(
            dimension_semantics=("arbitrary",)),
    )(x_flat)
    mean_std = mean_std.reshape(1)  # (1,) f32 scalar for SMEM

    # ---- pass 2: the block itself, tiled + double-buffered over batch ----
    tn = batch_tile or _pick_batch_tile(N, 16 * C * 4 * 12)
    out = pl.pallas_call(
        functools.partial(_decision_kernel, matmul_dtype=matmul_dtype),
        out_shape=jax.ShapeDtypeStruct((N, 1), jnp.float32),
        grid=(N // tn,),
        in_specs=[
            pl.BlockSpec((tn, 4, 4, C), lambda i: (i, 0, 0, 0)),          # x tile
            pl.BlockSpec(memory_space=pltpu.MemorySpace.SMEM),            # mean_std
            pl.BlockSpec((9 * C, C), lambda i: (0, 0)),                   # wc (resident)
            pl.BlockSpec((16 * C, C), lambda i: (0, 0)),                  # wp (resident)
            pl.BlockSpec((16, C), lambda i: (0, 0)),                      # std bias
            pl.BlockSpec((C, 1), lambda i: (0, 0)),                       # wo
        ],
        out_specs=pl.BlockSpec((tn, 1), lambda i: (i, 0)),
        compiler_params=pltpu.CompilerParams(
            dimension_semantics=("parallel",),           # megacore/2-TC sharding
            vmem_limit_bytes=32 * 1024 * 1024),          # explicit, safe on v5e..v7x
    )(x_nhwc, mean_std, wc_mat, wp_mat, s_bias, wo)
    return out.reshape(-1)


# ----------------------------------------------------------------------------
# Pure-JAX (XLA) reference of the PyTorch forward pass
# ----------------------------------------------------------------------------
def reference(x_nchw, w_conv_oihw, w_pool_oihw, w_out_lin):
    N = x_nchw.shape[0]
    var = jnp.var(x_nchw, axis=0)                       # biased
    mean_std = jnp.mean(jnp.sqrt(var + 1e-8))
    ms = jnp.broadcast_to(mean_std, (N, 1, 4, 4))
    xc = jnp.concatenate([x_nchw, ms], axis=1)
    y = jax.lax.conv_general_dilated(
        xc, w_conv_oihw, window_strides=(1, 1), padding=((1, 1), (1, 1)),
        dimension_numbers=("NCHW", "OIHW", "NCHW"),
        precision=jax.lax.Precision.HIGHEST)
    m = jnp.mean(y, axis=(2, 3), keepdims=True)
    v = jnp.var(y, axis=(2, 3), keepdims=True)
    y = (y - m) / jnp.sqrt(v + 1e-5)
    y = jnp.where(y > 0, y, 0.2 * y)
    y = jax.lax.conv_general_dilated(
        y, w_pool_oihw, window_strides=(1, 1), padding="VALID",
        dimension_numbers=("NCHW", "OIHW", "NCHW"),
        precision=jax.lax.Precision.HIGHEST)
    y = jnp.where(y > 0, y, 0.2 * y)
    y = y.reshape(N, -1)                                # [N, C]
    return (y @ w_out_lin.T).reshape(-1)


if __name__ == "__main__":
    key = jax.random.PRNGKey(0)
    k1, k2, k3, k4 = jax.random.split(key, 4)

    N, C, H, W = 2, 8, 4, 4
    x = jax.random.normal(k1, (N, C, H, W), jnp.float32)
    # shapes from the module's __init__ (Conv2d / Linear, all bias=False)
    w_conv = jax.random.normal(k2, (C, C + 1, 3, 3), jnp.float32) * 0.2
    w_pool = jax.random.normal(k3, (C, C, 4, 4), jnp.float32) * 0.2
    w_out = jax.random.normal(k4, (1, C), jnp.float32) * 0.2

    out = jax.block_until_ready(decision_block(x, w_conv, w_pool, w_out))
    assert out.shape == (N,)

    ref = reference(x, w_conv, w_pool, w_out)
    # bf16 matmul operands (f32 accumulation) -> slightly relaxed tolerance
    assert jnp.allclose(out, ref, rtol=2e-2, atol=2e-2), (out, ref)

    print("KERNEL_OK")
</pallas_src>

<mosaic_0001>
module attributes {stable_mosaic.version = 11 : i64} {
  func.func @_batch_std_kernel(%arg0: i32, %arg1: memref<2x16x8xf32, #tpu.memory_space<vmem>>, %arg2: memref<1x1xf32, #tpu.memory_space<vmem>>, %arg3: memref<16x8xf32, #tpu.memory_space<vmem>>, %arg4: memref<16x8xf32, #tpu.memory_space<vmem>>) attributes {dimension_semantics = [#tpu.dimension_semantics<arbitrary>], iteration_bounds = array<i64: 1>, scalar_prefetch = 0 : i64, scratch_operands = 2 : i64, tpu.core_type = #tpu.core_type<tc>, window_params = [{transform_indices = @transform_0, window_bounds = array<i64: 2, 16, 8>}, {pipeline_mode = #tpu.pipeline_mode<synchronous>, transform_indices = @transform_1, window_bounds = array<i64: 1, 1>}]} {
    %c0_i32 = arith.constant 0 : i32
    %0 = arith.cmpi eq, %arg0, %c0_i32 : i32
    %1 = arith.extui %0 : i1 to i32
    %c0_i32_0 = arith.constant 0 : i32
    %2 = arith.cmpi ne, %1, %c0_i32_0 : i32
    scf.if %2 {
      %cst_14 = arith.constant 0.000000e+00 : f32
      %16 = vector.broadcast %cst_14 : f32 to vector<16x8xf32>
      %c0_15 = arith.constant 0 : index
      %c0_16 = arith.constant 0 : index
      %17 = vector.load %arg3[%c0_15, %c0_16] : memref<16x8xf32, #tpu.memory_space<vmem>>, vector<16x8xf32>
      tpu.vector_store %arg3[%c0_15, %c0_16], %16 {strides = array<i32>} : memref<16x8xf32, #tpu.memory_space<vmem>>, vector<16x8xf32>,
      %cst_17 = arith.constant 0.000000e+00 : f32
      %18 = vector.broadcast %cst_17 : f32 to vector<16x8xf32>
      %c0_18 = arith.constant 0 : index
      %c0_19 = arith.constant 0 : index
      %19 = vector.load %arg4[%c0_18, %c0_19] : memref<16x8xf32, #tpu.memory_space<vmem>>, vector<16x8xf32>
      tpu.vector_store %arg4[%c0_18, %c0_19], %18 {strides = array<i32>} : memref<16x8xf32, #tpu.memory_space<vmem>>, vector<16x8xf32>,
    } else {
    }
    %c0 = arith.constant 0 : index
    %c0_1 = arith.constant 0 : index
    %c0_2 = arith.constant 0 : index
    %3 = vector.load %arg1[%c0, %c0_1, %c0_2] : memref<2x16x8xf32, #tpu.memory_space<vmem>>, vector<2x16x8xf32>
    %c0_3 = arith.constant 0 : index
    %c0_4 = arith.constant 0 : index
    %4 = vector.load %arg3[%c0_3, %c0_4] : memref<16x8xf32, #tpu.memory_space<vmem>>, vector<16x8xf32>
    %cst = arith.constant dense<0.000000e+00> : vector<16x8xf32>
    %5 = vector.multi_reduction <add>, %3, %cst [0] : vector<2x16x8xf32> to vector<16x8xf32>
    %6 = arith.addf %4, %5 : vector<16x8xf32>
    %c0_5 = arith.constant 0 : index
    %c0_6 = arith.constant 0 : index
    %7 = vector.load %arg3[%c0_5, %c0_6] : memref<16x8xf32, #tpu.memory_space<vmem>>, vector<16x8xf32>
    tpu.vector_store %arg3[%c0_5, %c0_6], %6 {strides = array<i32>} : memref<16x8xf32, #tpu.memory_space<vmem>>, vector<16x8xf32>,
    %c0_7 = arith.constant 0 : index
    %c0_8 = arith.constant 0 : index
    %8 = vector.load %arg4[%c0_7, %c0_8] : memref<16x8xf32, #tpu.memory_space<vmem>>, vector<16x8xf32>
    %9 = arith.mulf %3, %3 : vector<2x16x8xf32>
    %cst_9 = arith.constant dense<0.000000e+00> : vector<16x8xf32>
    %10 = vector.multi_reduction <add>, %9, %cst_9 [0] : vector<2x16x8xf32> to vector<16x8xf32>
    %11 = arith.addf %8, %10 : vector<16x8xf32>
    %c0_10 = arith.constant 0 : index
    %c0_11 = arith.constant 0 : index
    %12 = vector.load %arg4[%c0_10, %c0_11] : memref<16x8xf32, #tpu.memory_space<vmem>>, vector<16x8xf32>
    tpu.vector_store %arg4[%c0_10, %c0_11], %11 {strides = array<i32>} : memref<16x8xf32, #tpu.memory_space<vmem>>, vector<16x8xf32>,
    %c0_i32_12 = arith.constant 0 : i32
    %13 = arith.cmpi eq, %arg0, %c0_i32_12 : i32
    %14 = arith.extui %13 : i1 to i32
    %c0_i32_13 = arith.constant 0 : i32
    %15 = arith.cmpi ne, %14, %c0_i32_13 : i32
    scf.if %15 {
      %c0_14 = arith.constant 0 : index
      %c0_15 = arith.constant 0 : index
      %16 = vector.load %arg3[%c0_14, %c0_15] : memref<16x8xf32, #tpu.memory_space<vmem>>, vector<16x8xf32>
      %cst_16 = arith.constant 5.000000e-01 : f32
      %17 = vector.broadcast %cst_16 : f32 to vector<16x8xf32>
      %18 = arith.mulf %16, %17 : vector<16x8xf32>
      %c0_17 = arith.constant 0 : index
      %c0_18 = arith.constant 0 : index
      %19 = vector.load %arg4[%c0_17, %c0_18] : memref<16x8xf32, #tpu.memory_space<vmem>>, vector<16x8xf32>
      %cst_19 = arith.constant 5.000000e-01 : f32
      %20 = vector.broadcast %cst_19 : f32 to vector<16x8xf32>
      %21 = arith.mulf %19, %20 : vector<16x8xf32>
      %22 = arith.mulf %18, %18 : vector<16x8xf32>
      %23 = arith.subf %21, %22 : vector<16x8xf32>
      %cst_20 = arith.constant 0.000000e+00 : f32
      %24 = vector.broadcast %cst_20 : f32 to vector<16x8xf32>
      %25 = arith.maximumf %23, %24 : vector<16x8xf32>
      %cst_21 = arith.constant 9.99999993E-9 : f32
      %26 = vector.broadcast %cst_21 : f32 to vector<16x8xf32>
      %27 = arith.addf %25, %26 : vector<16x8xf32>
      %28 = math.sqrt %27 : vector<16x8xf32>
      %29 = vector.shape_cast %28 : vector<16x8xf32> to vector<1x16x8xf32>
      %cst_22 = arith.constant dense<0.000000e+00> : vector<1xf32>
      %30 = vector.multi_reduction <add>, %29, %cst_22 [1, 2] : vector<1x16x8xf32> to vector<1xf32>
      %31 = vector.shape_cast %30 : vector<1xf32> to vector<1x1x1xf32>
      %32 = vector.extract %31[0, 0, 0] : f32 from vector<1x1x1xf32>
      %cst_23 = arith.constant 1.280000e+02 : f32
      %33 = arith.divf %32, %cst_23 : f32
      %34 = vector.broadcast %33 : f32 to vector<1x1xf32>
      %c0_24 = arith.constant 0 : index
      %c0_25 = arith.constant 0 : index
      %35 = vector.load %arg2[%c0_24, %c0_25] : memref<1x1xf32, #tpu.memory_space<vmem>>, vector<1x1xf32>
      tpu.vector_store %arg2[%c0_24, %c0_25], %34 {strides = array<i32>} : memref<1x1xf32, #tpu.memory_space<vmem>>, vector<1x1xf32>,
    } else {
    }
    return
  }
  func.func @transform_0(%arg0: i32) -> (i32, i32, i32) {
    %c0_i32 = arith.constant 0 : i32
    %c0_i32_0 = arith.constant 0 : i32
    %c0_i32_1 = arith.constant 0 : i32
    return %arg0, %c0_i32, %c0_i32_0 : i32, i32, i32
  }
  func.func @transform_1(%arg0: i32) -> (i32, i32) {
    %c0_i32 = arith.constant 0 : i32
    %c0_i32_0 = arith.constant 0 : i32
    %c0_i32_1 = arith.constant 0 : i32
    return %c0_i32, %c0_i32_0 : i32, i32
  }
}

</mosaic_0001>

<llo_original>
// kernel: tpu_custom_call.1
$region0: #{tpu_custom_call.1}
  #allocation0 [shape = 'u32[]', space=smem, size = 0x4, offset = 0x4, fixed_abs, tag = 'smem constant byte address 0x4 - core index']
  #allocation1 [shape = 'u32[144,128]{1,0:T(1,128)}', space=vmem, size = 0x12000, scoped, tag = 'internal scratch']
  #allocation2 [shape = 'f32[16,8]{1,0:T(8,128)}', space=vmem, size = 0x2000, scoped, tag = 'scratch operand']
  #allocation3 [shape = 'f32[16,8]{1,0:T(8,128)}', space=vmem, size = 0x2000, scoped, tag = 'scratch operand']
  %s0 = inlined_call_operand.vmem [shape: f32[2,16,8], index: 0, kind: input, shape index: {}]
  %s1 = inlined_call_operand.hbm [shape: f32[1,1], index: 1, kind: output, shape index: {}]
  %s2 = sld [smem:[#allocation0]]
  $region22: #{tpu_custom_call.1} parent=0
    _
  %s4 = ssub.s32 1, %s2
  %s5 = scalar_select 0, %s4, %s2
  $region1: #{tpu_custom_call.1} parent=0
    #allocation4 [shape = 'u8[512]{0}', space=vmem, size = 0x400, scoped, tag = 'output window, operand 0, single buffered']
    #allocation5 [shape = 's32[1]{0}', space=sflag, size = 0x4, scoped, tag = 'scoped memory for tpu_custom_call.1']
    %6 = vsyncpa [#allocation5], 0
    // Predicated region
    $region2: #{tpu_custom_call.1} parent=1 // pred_check
      _
    $region3: #{tpu_custom_call.1} parent=1 // pred_check_branch
      %8 = sbr.rel (0) target = $region5
    $region4: #{tpu_custom_call.1} parent=1 // pred_region
      _
    $region5: #{tpu_custom_call.1} parent=1 // pred_fallthru
      _
    %p9 = scmp.eq.s32.totalorder 0, 0
    // Predicated region
    $region6: #{tpu_custom_call.1} parent=1 // pred_check
      %p10 = pneg %p9
    $region7: #{tpu_custom_call.1} parent=1 // pred_check_branch
      %12 = sbr.rel (%p10) target = $region9
    $region8: #{tpu_custom_call.1} parent=1 // pred_region
      %vm13 = vcmask 64512
      %14 = vst.msk [vmem:[#allocation2] sm:$0xff] %vm13, 0.0
      %15 = vst.msk [vmem:[#allocation2 + $0x8] sm:$0xff] %vm13, 0.0
      %16 = vst.msk [vmem:[#allocation3] sm:$0xff] %vm13, 0.0
      %17 = vst.msk [vmem:[#allocation3 + $0x8] sm:$0xff] %vm13, 0.0
    $region9: #{tpu_custom_call.1} parent=1 // pred_fallthru
      _
    %v18 = vld [vmem:[%s0] sm:$0xff]
    %v19 = vld [vmem:[%s0 + $0x8] sm:$0xff]
    %v20 = vld [vmem:[%s0 + $0x10] sm:$0xff]
    %v21 = vld [vmem:[%s0 + $0x18] sm:$0xff]
    %v22 = vld [vmem:[#allocation2] sm:$0xff]
    %v23 = vld [vmem:[#allocation2 + $0x8] sm:$0xff]
    %vm24 = vcmask 64512
    %v25 = vsel %vm24, %v18, 0.0
    %v26 = vsel %vm24, %v20, 0.0
    %v27 = vadd.f32 %v25, %v26
    %v28 = vsel %vm24, %v19, 0.0
    %v29 = vsel %vm24, %v21, 0.0
    %v30 = vadd.f32 %v28, %v29
    %v31 = vadd.f32 %v22, %v27
    %v32 = vadd.f32 %v23, %v30
    %33 = vst.msk [vmem:[#allocation2] sm:$0xff] %vm24, %v31
    %34 = vst.msk [vmem:[#allocation2 + $0x8] sm:$0xff] %vm24, %v32
    %v35 = vld [vmem:[#allocation3] sm:$0xff]
    %v36 = vld [vmem:[#allocation3 + $0x8] sm:$0xff]
    %v37 = vmul.f32 %v18, %v18
    %v38 = vmul.f32 %v19, %v19
    %v39 = vmul.f32 %v20, %v20
    %v40 = vmul.f32 %v21, %v21
    %v41 = vsel %vm24, %v37, 0.0
    %v42 = vsel %vm24, %v39, 0.0
    %v43 = vadd.f32 %v41, %v42
    %v44 = vsel %vm24, %v38, 0.0
    %v45 = vsel %vm24, %v40, 0.0
    %v46 = vadd.f32 %v44, %v45
    %v47 = vadd.f32 %v35, %v43
    %v48 = vadd.f32 %v36, %v46
    %49 = vst.msk [vmem:[#allocation3] sm:$0xff] %vm24, %v47
    %50 = vst.msk [vmem:[#allocation3 + $0x8] sm:$0xff] %vm24, %v48
    // Predicated region
    $region10: #{tpu_custom_call.1} parent=1 // pred_check
      %p51 = pneg %p9
    $region11: #{tpu_custom_call.1} parent=1 // pred_check_branch
      %53 = sbr.rel (%p51) target = $region13
    $region12: #{tpu_custom_call.1} parent=1 // pred_region
      %v54 = vld [vmem:[#allocation2] sm:$0xff]
      %v55 = vld [vmem:[#allocation2 + $0x8] sm:$0xff]
      %v56 = vmul.f32 %v54, 0.5
      %v57 = vmul.f32 %v55, 0.5
      %v58 = vld [vmem:[#allocation3] sm:$0xff]
      %v59 = vld [vmem:[#allocation3 + $0x8] sm:$0xff]
      %v60 = vmul.f32 %v58, 0.5
      %v61 = vmul.f32 %v59, 0.5
      %v62 = vmul.f32 %v56, %v56
      %v63 = vmul.f32 %v57, %v57
      %v64 = vsub.f32 %v60, %v62
      %v65 = vsub.f32 %v61, %v63
      %v66 = vmax.f32 %v64, 0.0
      %v67 = vmax.f32 %v65, 0.0
      %v68 = vadd.f32 %v66, 1e-08
      %v69 = vadd.f32 %v67, 1e-08
      %v70 = vrsqrt.pop %v68
      %v71 = vmul.f32 %v68, %v70
      %vm72 = vcmp.eq.f32.partialorder %v68, inf
      %v73 = vsel %vm72, %v68, %v71
      %vm74 = vcmp.eq.f32.partialorder %v68, 0.0
      %v75 = vand.u32 %v68, 2147483648
      %v76 = vsel %vm74, %v75, %v73
      %v77 = vrsqrt.pop %v69
      %v78 = vmul.f32 %v69, %v77
      %vm79 = vcmp.eq.f32.partialorder %v69, inf
      %v80 = vsel %vm79, %v69, %v78
      %vm81 = vcmp.eq.f32.partialorder %v69, 0.0
      %v82 = vand.u32 %v69, 2147483648
      %v83 = vsel %vm81, %v82, %v80
      %v84 = vsel %vm24, %v76, 0.0
      %v85 = vsel %vm24, %v83, 0.0
      %v86 = vadd.f32 %v84, %v85
      %87 = vadd.xlane.f32.xlu0 %v86
      %v88 = vpop.xlane.xlu0 %87
      %v89 = vrot.slane %v88, 4
      %v90 = vadd.f32 %v88, %v89
      %v91 = vrot.slane %v90, 2
      %v92 = vadd.f32 %v90, %v91
      %v93 = vrot.slane %v92, 1
      %v94 = vadd.f32 %v92, %v93
      %s95 = vtos %v94
      %v96 = vrcp.pop 128.0
      %s97 = vtos %v96
      %s98 = smul.f32 %s95, %s97
      %v99 = vstv %s98
      %vm100 = vcmask 0
      %101 = vst.msk [vmem:[#allocation4] sm:$0x1] %vm100, %v99
    $region13: #{tpu_custom_call.1} parent=1 // pred_fallthru
      _
    // Predicated region
    $region14: #{tpu_custom_call.1} parent=1 // pred_check
      _
    $region15: #{tpu_custom_call.1} parent=1 // pred_check_branch
      %103 = sbr.rel (0) target = $region17
    $region16: #{tpu_custom_call.1} parent=1 // pred_region
      %s105 = ssub.s32 16, 16
      %106 = vsyncadd [#allocation5], %s105
      %s108 = sshll.u32 [#allocation4], 4
      %s109 = int_to_ptr.vmem [resolvable:$true] %s108
      %111 = dma.vmem_to_hbm [thread:$0]  %s109, 16, %s1, [#allocation5]
    $region17: #{tpu_custom_call.1} parent=1 // pred_fallthru
      _
    // Predicated region
    $region18: #{tpu_custom_call.1} parent=1 // pred_check
      _
    $region19: #{tpu_custom_call.1} parent=1 // pred_check_branch
      %113 = sbr.rel (0) target = $region21
    $region20: #{tpu_custom_call.1} parent=1 // pred_region
      %114 = dma.done [#allocation5], 16
    $region21: #{tpu_custom_call.1} parent=1 // pred_fallthru
      _
    %115 = vsyncpa [#allocation5], 1

</llo_original>
